<compile_context>
chip_gen: v5e
topology: v5e:2x2
jax: 0.10.0
libtpu: 0.0.40
codegen_flags: <defaults>
</compile_context>

<pallas_src>
import functools

import jax
import jax.numpy as jnp
from jax.experimental import pallas as pl
from jax.experimental.pallas import tpu as pltpu

LANES = 128              # vreg lane width
CHUNK_ROWS = 128         # rows per inner compute step (64 KiB f32 -> no spills)
MAX_BLOCK_ROWS_CAP = 32768


def _round_up(x, m):
    return ((x + m - 1) // m) * m


def _vmem_capacity_bytes():
    """Best-effort per-core VMEM capacity; conservative default fits all gens."""
    try:
        cap = int(getattr(pltpu.get_tpu_info(), "vmem_capacity_bytes"))
        if cap > 0:
            return cap
    except Exception:
        pass
    return 64 * 1024 * 1024  # v7x per-TC VMEM; safe lower bound everywhere


def _num_tc_splits():
    """2 splits on multi-TensorCore parts (v7x, megacore v4/v5p), 1 on v5e/v6e."""
    try:
        kind = jax.devices()[0].device_kind.lower()
    except Exception:
        return 2
    if any(s in kind for s in ("v5 lite", "v5e", "v5litepod", "v6 lite", "v6e")):
        return 1
    return 2


def _loss_kernel(pred_ref, tgt_ref, out_ref, acc_ref, *,
                 lambda_param, valid_rows, block_rows, chunk_rows,
                 steps_per_split):
    c = pl.program_id(0)   # split index (parallel across TensorCores)
    k = pl.program_id(1)   # reduction step within the split

    @pl.when(k == 0)
    def _():
        acc_ref[...] = jnp.zeros_like(acc_ref)

    lam = jnp.float32(lambda_param)
    neg_lam = jnp.float32(-lambda_param)
    # UNclamped block origin; the index_map only clamps the DMA block index.
    block_row0 = (c * steps_per_split + k) * block_rows
    num_chunks = block_rows // chunk_rows
    sub = chunk_rows // 8
    zero_part = jnp.zeros((8, LANES), jnp.float32)

    def chunk_weight(j):
        r0 = j * chunk_rows
        if not isinstance(r0, int):
            r0 = pl.multiple_of(r0, chunk_rows)
        p = pred_ref[pl.ds(r0, chunk_rows), :].astype(jnp.float32)
        t = tgt_ref[pl.ds(r0, chunk_rows), :].astype(jnp.float32)
        d = p - t
        if lambda_param >= 0:
            # where(p>=t, |d|, lam*|d|) == max(d, -lam*d) for lam >= 0:
            # sub + mul + max = 3 VALU ops/elem vs 5 (sub/abs/cmp/mul/select).
            w = jnp.maximum(d, neg_lam * d)
        else:
            ad = jnp.abs(d)
            w = jnp.where(d >= 0, ad, lam * ad)
        return r0, w

    def reduce_block(body):
        if num_chunks == 1:
            return body(0, zero_part)
        return jax.lax.fori_loop(0, num_chunks, body, zero_part, unroll=2)

    fully_valid = block_row0 + block_rows <= valid_rows

    @pl.when(fully_valid)
    def _():
        # Hot path: no per-element masking for fully-interior blocks.
        def body(j, part):
            _, w = chunk_weight(j)
            return part + jnp.sum(w.reshape(sub, 8, LANES), axis=0)
        acc_ref[...] += reduce_block(body)

    @pl.when(jnp.logical_not(fully_valid))
    def _():
        # Only the ragged tail block and any clamped duplicate block land here.
        chunk_iota = jax.lax.broadcasted_iota(jnp.int32, (chunk_rows, LANES), 0)

        def body(j, part):
            r0, w = chunk_weight(j)
            row_ids = chunk_iota + (block_row0 + r0)
            w = jnp.where(row_ids < valid_rows, w, 0.0)
            return part + jnp.sum(w.reshape(sub, 8, LANES), axis=0)
        acc_ref[...] += reduce_block(body)

    @pl.when(k == pl.num_programs(1) - 1)
    def _():
        # Single cross-lane reduce + scalar SMEM store per split.
        out_ref[0, 0] = jnp.sum(acc_ref[...])


def custom_loss(predictions, targets, lambda_param=2):
    assert predictions.shape == targets.shape
    lambda_param = float(lambda_param)   # static Python scalar
    n_elements = predictions.size
    itemsize = jnp.dtype(predictions.dtype).itemsize

    p_flat = predictions.reshape(-1)
    t_flat = targets.reshape(-1)

    aligned = (n_elements // LANES) * LANES
    tail = n_elements - aligned

    tail_sum = jnp.float32(0.0)
    if tail:
        # <=127 trailing elements: sum them in plain JAX instead of padding
        # (jnp.pad would re-materialize both full inputs in HBM).
        pt = p_flat[aligned:].astype(jnp.float32)
        tt = t_flat[aligned:].astype(jnp.float32)
        dt = pt - tt
        tail_sum = jnp.sum(
            jnp.where(dt >= 0, jnp.abs(dt), jnp.float32(lambda_param) * jnp.abs(dt)))
        p_flat = p_flat[:aligned]
        t_flat = t_flat[:aligned]

    rows = aligned // LANES
    if rows == 0:
        return tail_sum / n_elements

    p2d = p_flat.reshape(rows, LANES)
    t2d = t_flat.reshape(rows, LANES)

    # ---------------- generation-aware sizing ----------------
    vmem_cap = _vmem_capacity_bytes()
    # 2 inputs x 2 pipeline buffers of (block_rows, LANES) must leave headroom.
    max_block_rows = (vmem_cap // 2) // (4 * LANES * itemsize)
    max_block_rows = max(CHUNK_ROWS,
                         min(MAX_BLOCK_ROWS_CAP,
                             (max_block_rows // CHUNK_ROWS) * CHUNK_ROWS))

    if rows <= CHUNK_ROWS:
        # Tiny input: one block sized to the data.  Pad rows to a multiple of 8
        # with zeros (pred == tgt == 0 -> contributes 0), all rows "valid".
        rows_p = _round_up(rows, 8)
        if rows_p != rows:
            p2d = jnp.pad(p2d, ((0, rows_p - rows), (0, 0)))
            t2d = jnp.pad(t2d, ((0, rows_p - rows), (0, 0)))
        block_rows = chunk_rows = valid_rows = kernel_rows = rows_p
    else:
        chunk_rows = CHUNK_ROWS
        block_rows = min(max_block_rows, _round_up(rows, CHUNK_ROWS))
        valid_rows = kernel_rows = rows

    total_blocks = pl.cdiv(kernel_rows, block_rows)
    num_splits = 1 if total_blocks < 2 else _num_tc_splits()
    steps_per_split = pl.cdiv(total_blocks, num_splits)

    in_buffer_bytes = 2 * 2 * block_rows * LANES * itemsize
    vmem_limit = int(min(vmem_cap,
                         max(32 * 1024 * 1024, in_buffer_bytes + (4 << 20))))

    def in_index_map(c, k):
        # Clamp so no out-of-bounds block DMA is ever issued; the kernel's
        # (unclamped) row mask zeroes a duplicated block's contribution.
        return (jnp.minimum(c * steps_per_split + k, total_blocks - 1), 0)

    kernel = functools.partial(
        _loss_kernel,
        lambda_param=lambda_param,
        valid_rows=valid_rows,
        block_rows=block_rows,
        chunk_rows=chunk_rows,
        steps_per_split=steps_per_split,
    )

    # TODO(synk): optional bf16 compute fast path for v6e/v7x (keep f32 upcast
    # for bit-stable accumulation across generations).
    partials = pl.pallas_call(
        kernel,
        out_shape=jax.ShapeDtypeStruct((num_splits, 1), jnp.float32),
        grid_spec=pltpu.PrefetchScalarGridSpec(
            num_scalar_prefetch=0,
            grid=(num_splits, steps_per_split),
            in_specs=[
                pl.BlockSpec((block_rows, LANES), in_index_map),
                pl.BlockSpec((block_rows, LANES), in_index_map),
            ],
            out_specs=pl.BlockSpec((1, 1), lambda c, k: (c, 0),
                                   memory_space=pltpu.SMEM),
            scratch_shapes=[pltpu.VMEM((8, LANES), jnp.float32)],
        ),
        compiler_params=pltpu.CompilerParams(
            dimension_semantics=("parallel", "arbitrary"),
            vmem_limit_bytes=vmem_limit,
        ),
        cost_estimate=pl.CostEstimate(
            flops=3 * n_elements,
            transcendentals=0,
            bytes_accessed=2 * aligned * itemsize + num_splits * 4,
        ),
    )(p2d, t2d)

    return (jnp.sum(partials) + tail_sum) / n_elements


def _reference_loss(preds, tgts, lam):
    diff = preds - tgts
    return jnp.mean(jnp.where(preds >= tgts, jnp.abs(diff), lam * jnp.abs(diff)))


if __name__ == "__main__":
    key = jax.random.PRNGKey(0)

    # Small NCHW shapes consistent with a segmentation-style prediction/target.
    cases = [
        (2, 4, 16, 16),      # tiny path (single small block)
        (3, 5, 17, 19),      # ragged tail (numel % 128 != 0) + small path
        (1, 4, 325, 128),    # larger path: chunked fori_loop + masked tail block
    ]

    loss = None
    for i, shape in enumerate(cases):
        key, k1, k2 = jax.random.split(key, 3)
        preds = jax.random.normal(k1, shape, dtype=jnp.float32)
        tgts = jax.random.normal(k2, shape, dtype=jnp.float32)

        loss = custom_loss(preds, tgts, lambda_param=2)
        jax.block_until_ready(loss)

        ref = _reference_loss(preds, tgts, 2.0)
        assert jnp.allclose(loss, ref, rtol=1e-4, atol=1e-6), (shape, loss, ref)

    print("KERNEL_OK")
</pallas_src>

<mosaic_0001>
module attributes {stable_mosaic.version = 11 : i64} {
  func.func @_loss_kernel(%arg0: i32, %arg1: i32, %arg2: memref<16x128xf32, #tpu.memory_space<vmem>>, %arg3: memref<16x128xf32, #tpu.memory_space<vmem>>, %arg4: memref<1x1xf32, #tpu.memory_space<smem>>, %arg5: memref<8x128xf32, #tpu.memory_space<vmem>>) attributes {dimension_semantics = [#tpu.dimension_semantics<parallel>, #tpu.dimension_semantics<arbitrary>], iteration_bounds = array<i64: 1, 1>, scalar_prefetch = 0 : i64, scratch_operands = 1 : i64, tpu.core_type = #tpu.core_type<tc>, window_params = [{transform_indices = @transform_0, window_bounds = array<i64: 16, 128>}, {transform_indices = @transform_1, window_bounds = array<i64: 16, 128>}, {transform_indices = @transform_2, window_bounds = array<i64: 1, 1>}]} {
    %c0_i32 = arith.constant 0 : i32
    %0 = arith.cmpi eq, %arg1, %c0_i32 : i32
    %1 = arith.extui %0 : i1 to i32
    %c0_i32_0 = arith.constant 0 : i32
    %2 = arith.cmpi ne, %1, %c0_i32_0 : i32
    scf.if %2 {
      %cst_9 = arith.constant 0.000000e+00 : f32
      %17 = vector.broadcast %cst_9 : f32 to vector<8x128xf32>
      %c0 = arith.constant 0 : index
      %c0_10 = arith.constant 0 : index
      %18 = vector.load %arg5[%c0, %c0_10] : memref<8x128xf32, #tpu.memory_space<vmem>>, vector<8x128xf32>
      tpu.vector_store %arg5[%c0, %c0_10], %17 {strides = array<i32>} : memref<8x128xf32, #tpu.memory_space<vmem>>, vector<8x128xf32>,
    } else {
    }
    %c1_i32 = arith.constant 1 : i32
    %3 = arith.muli %arg0, %c1_i32 : i32
    %4 = arith.addi %3, %arg1 : i32
    %c16_i32 = arith.constant 16 : i32
    %5 = arith.muli %4, %c16_i32 : i32
    %cst = arith.constant 0.000000e+00 : f32
    %6 = vector.broadcast %cst : f32 to vector<8x128xf32>
    %c16_i32_1 = arith.constant 16 : i32
    %7 = arith.addi %5, %c16_i32_1 : i32
    %c16_i32_2 = arith.constant 16 : i32
    %8 = arith.cmpi sle, %7, %c16_i32_2 : i32
    %9 = arith.extui %8 : i1 to i32
    %cst_3 = arith.constant -2.000000e+00 : f32
    %c0_i32_4 = arith.constant 0 : i32
    %10 = arith.cmpi ne, %9, %c0_i32_4 : i32
    scf.if %10 {
      %c0 = arith.constant 0 : index
      %c0_9 = arith.constant 0 : index
      %17 = vector.load %arg5[%c0, %c0_9] : memref<8x128xf32, #tpu.memory_space<vmem>>, vector<8x128xf32>
      %c0_10 = arith.constant 0 : index
      %c0_11 = arith.constant 0 : index
      %18 = vector.load %arg2[%c0_10, %c0_11] : memref<16x128xf32, #tpu.memory_space<vmem>>, vector<16x128xf32>
      %c0_12 = arith.constant 0 : index
      %c0_13 = arith.constant 0 : index
      %19 = vector.load %arg3[%c0_12, %c0_13] : memref<16x128xf32, #tpu.memory_space<vmem>>, vector<16x128xf32>
      %20 = arith.subf %18, %19 : vector<16x128xf32>
      %21 = vector.broadcast %cst_3 : f32 to vector<16x128xf32>
      %22 = arith.mulf %21, %20 : vector<16x128xf32>
      %23 = arith.maximumf %20, %22 : vector<16x128xf32>
      %24 = vector.shape_cast %23 : vector<16x128xf32> to vector<2x8x128xf32>
      %cst_14 = arith.constant dense<0.000000e+00> : vector<8x128xf32>
      %25 = vector.multi_reduction <add>, %24, %cst_14 [0] : vector<2x8x128xf32> to vector<8x128xf32>
      %26 = arith.addf %6, %25 : vector<8x128xf32>
      %27 = arith.addf %17, %26 : vector<8x128xf32>
      %c0_15 = arith.constant 0 : index
      %c0_16 = arith.constant 0 : index
      %28 = vector.load %arg5[%c0_15, %c0_16] : memref<8x128xf32, #tpu.memory_space<vmem>>, vector<8x128xf32>
      tpu.vector_store %arg5[%c0_15, %c0_16], %27 {strides = array<i32>} : memref<8x128xf32, #tpu.memory_space<vmem>>, vector<8x128xf32>,
    } else {
    }
    %true = arith.constant true
    %11 = arith.xori %8, %true : i1
    %12 = arith.extui %11 : i1 to i32
    %cst_5 = arith.constant -2.000000e+00 : f32
    %c0_i32_6 = arith.constant 0 : i32
    %13 = arith.cmpi ne, %12, %c0_i32_6 : i32
    scf.if %13 {
      %17 = tpu.iota {dimensions = array<i32: 0>} : vector<16x128xi32>
      %c0 = arith.constant 0 : index
      %c0_9 = arith.constant 0 : index
      %18 = vector.load %arg5[%c0, %c0_9] : memref<8x128xf32, #tpu.memory_space<vmem>>, vector<8x128xf32>
      %c0_10 = arith.constant 0 : index
      %c0_11 = arith.constant 0 : index
      %19 = vector.load %arg2[%c0_10, %c0_11] : memref<16x128xf32, #tpu.memory_space<vmem>>, vector<16x128xf32>
      %c0_12 = arith.constant 0 : index
      %c0_13 = arith.constant 0 : index
      %20 = vector.load %arg3[%c0_12, %c0_13] : memref<16x128xf32, #tpu.memory_space<vmem>>, vector<16x128xf32>
      %21 = arith.subf %19, %20 : vector<16x128xf32>
      %22 = vector.broadcast %cst_5 : f32 to vector<16x128xf32>
      %23 = arith.mulf %22, %21 : vector<16x128xf32>
      %24 = arith.maximumf %21, %23 : vector<16x128xf32>
      %c0_i32_14 = arith.constant 0 : i32
      %25 = arith.addi %5, %c0_i32_14 : i32
      %26 = vector.broadcast %25 : i32 to vector<16x128xi32>
      %27 = arith.addi %17, %26 : vector<16x128xi32>
      %c16_i32_15 = arith.constant 16 : i32
      %28 = vector.broadcast %c16_i32_15 : i32 to vector<16x128xi32>
      %29 = arith.cmpi slt, %27, %28 : vector<16x128xi32>
      %cst_16 = arith.constant 0.000000e+00 : f32
      %30 = vector.broadcast %cst_16 : f32 to vector<16x128xf32>
      %31 = arith.select %29, %24, %30 : vector<16x128xi1>, vector<16x128xf32>
      %32 = vector.shape_cast %31 : vector<16x128xf32> to vector<2x8x128xf32>
      %cst_17 = arith.constant dense<0.000000e+00> : vector<8x128xf32>
      %33 = vector.multi_reduction <add>, %32, %cst_17 [0] : vector<2x8x128xf32> to vector<8x128xf32>
      %34 = arith.addf %6, %33 : vector<8x128xf32>
      %35 = arith.addf %18, %34 : vector<8x128xf32>
      %c0_18 = arith.constant 0 : index
      %c0_19 = arith.constant 0 : index
      %36 = vector.load %arg5[%c0_18, %c0_19] : memref<8x128xf32, #tpu.memory_space<vmem>>, vector<8x128xf32>
      tpu.vector_store %arg5[%c0_18, %c0_19], %35 {strides = array<i32>} : memref<8x128xf32, #tpu.memory_space<vmem>>, vector<8x128xf32>,
    } else {
    }
    %c0_i32_7 = arith.constant 0 : i32
    %14 = arith.cmpi eq, %arg1, %c0_i32_7 : i32
    %15 = arith.extui %14 : i1 to i32
    %c0_i32_8 = arith.constant 0 : i32
    %16 = arith.cmpi ne, %15, %c0_i32_8 : i32
    scf.if %16 {
      %c0 = arith.constant 0 : index
      %c0_9 = arith.constant 0 : index
      %17 = vector.load %arg5[%c0, %c0_9] : memref<8x128xf32, #tpu.memory_space<vmem>>, vector<8x128xf32>
      %18 = vector.shape_cast %17 : vector<8x128xf32> to vector<1x8x128xf32>
      %cst_10 = arith.constant dense<0.000000e+00> : vector<1xf32>
      %19 = vector.multi_reduction <add>, %18, %cst_10 [1, 2] : vector<1x8x128xf32> to vector<1xf32>
      %20 = vector.shape_cast %19 : vector<1xf32> to vector<1x1x1xf32>
      %21 = vector.extract %20[0, 0, 0] : f32 from vector<1x1x1xf32>
      %c0_11 = arith.constant 0 : index
      %c0_12 = arith.constant 0 : index
      %22 = memref.load %arg4[%c0_11, %c0_12] : memref<1x1xf32, #tpu.memory_space<smem>>
      memref.store %21, %arg4[%c0_11, %c0_12] : memref<1x1xf32, #tpu.memory_space<smem>>
    } else {
    }
    return
  }
  func.func @transform_0(%arg0: i32, %arg1: i32) -> (i32, i32) {
    %c1_i32 = arith.constant 1 : i32
    %0 = arith.muli %arg0, %c1_i32 : i32
    %1 = arith.addi %0, %arg1 : i32
    %c0_i32 = arith.constant 0 : i32
    %2 = arith.minsi %1, %c0_i32 : i32
    %c0_i32_0 = arith.constant 0 : i32
    %c0_i32_1 = arith.constant 0 : i32
    return %2, %c0_i32_0 : i32, i32
  }
  func.func @transform_1(%arg0: i32, %arg1: i32) -> (i32, i32) {
    %c1_i32 = arith.constant 1 : i32
    %0 = arith.muli %arg0, %c1_i32 : i32
    %1 = arith.addi %0, %arg1 : i32
    %c0_i32 = arith.constant 0 : i32
    %2 = arith.minsi %1, %c0_i32 : i32
    %c0_i32_0 = arith.constant 0 : i32
    %c0_i32_1 = arith.constant 0 : i32
    return %2, %c0_i32_0 : i32, i32
  }
  func.func @transform_2(%arg0: i32, %arg1: i32) -> (i32, i32) {
    %c0_i32 = arith.constant 0 : i32
    %c0_i32_0 = arith.constant 0 : i32
    return %arg0, %c0_i32 : i32, i32
  }
}

</mosaic_0001>

<llo_original>
// kernel: tpu_custom_call.1
$region0: #{tpu_custom_call.1}
  #allocation0 [shape = 'u32[]', space=smem, size = 0x4, offset = 0x4, fixed_abs, tag = 'smem constant byte address 0x4 - core index']
  #allocation1 [shape = 'u32[72,128]{1,0:T(1,128)}', space=vmem, size = 0x9000, scoped, tag = 'internal scratch']
  #allocation2 [shape = 'f32[8,128]{1,0:T(8,128)}', space=vmem, size = 0x1000, scoped, tag = 'scratch operand']
  %s0 = inlined_call_operand.hbm [shape: f32[16,128], index: 0, kind: input, shape index: {}]
  %s1 = inlined_call_operand.hbm [shape: f32[16,128], index: 1, kind: input, shape index: {}]
  %s2 = inlined_call_operand.hbm [shape: f32[1,1], index: 2, kind: output, shape index: {}]
  %s3 = sld [smem:[#allocation0]]
  $region42: #{tpu_custom_call.1} parent=0
    _
  %s5 = ssub.s32 1, %s3
  %s6 = scalar_select 0, %s5, %s3
  $region1: #{tpu_custom_call.1} parent=0
    #allocation3 [shape = 'u8[8192]{0}', space=vmem, size = 0x2000, scoped, tag = 'input window, operand 0, single buffered']
    #allocation4 [shape = 's32[1]{0}', space=sflag, size = 0x4, scoped, tag = 'scoped memory for tpu_custom_call.1']
    #allocation5 [shape = 's32[1]{0}', space=sflag, size = 0x4, scoped, tag = 'scoped memory for tpu_custom_call.1']
    #allocation6 [shape = 'u8[8192]{0}', space=vmem, size = 0x2000, scoped, tag = 'input window, operand 1, single buffered']
    #allocation7 [shape = 's32[1]{0}', space=sflag, size = 0x4, scoped, tag = 'scoped memory for tpu_custom_call.1']
    #allocation8 [shape = 'u8[512]{0}', space=smem, size = 0x200, scoped, tag = 'output window, operand 0, single buffered']
    %7 = vsyncpa [#allocation4], 0
    %8 = vsyncpa [#allocation7], 0
    %9 = vsyncpa [#allocation5], 0
    // Predicated region
    $region2: #{tpu_custom_call.1} parent=1 // pred_check
      _
    $region3: #{tpu_custom_call.1} parent=1 // pred_check_branch
      %11 = sbr.rel (0) target = $region5
    $region4: #{tpu_custom_call.1} parent=1 // pred_region
      %s12 = sadd.s32 0, 0
      %p13 = scmp.lt.s32.totalorder %s12, 0
      %s14 = scalar_select %p13, %s12, 0
      %s15 = smul.u32 2, %s14
      %17 = vsyncadd [#allocation4], 0
      %s18 = smul.addr %s15, 8
      %s19 = scalar_lea.hbm %s0, %s18
      %s20 = sshll.u32 %s19, 4
      %s21 = int_to_ptr.hbm [resolvable:$true] %s20
      %s22 = sshll.u32 [#allocation3], 4
      %s23 = int_to_ptr.vmem [resolvable:$true] %s22
      %28 = dma.hbm_to_vmem [thread:$0]  %s21, 256, %s23, [#allocation4], 128, 128, 8
    $region5: #{tpu_custom_call.1} parent=1 // pred_fallthru
      _
    // Predicated region
    $region6: #{tpu_custom_call.1} parent=1 // pred_check
      _
    $region7: #{tpu_custom_call.1} parent=1 // pred_check_branch
      %30 = sbr.rel (0) target = $region9
    $region8: #{tpu_custom_call.1} parent=1 // pred_region
      %s31 = sadd.s32 0, 0
      %p32 = scmp.lt.s32.totalorder %s31, 0
      %s33 = scalar_select %p32, %s31, 0
      %s34 = smul.u32 2, %s33
      %36 = vsyncadd [#allocation7], 0
      %s37 = smul.addr %s34, 8
      %s38 = scalar_lea.hbm %s1, %s37
      %s39 = sshll.u32 %s38, 4
      %s40 = int_to_ptr.hbm [resolvable:$true] %s39
      %s41 = sshll.u32 [#allocation6], 4
      %s42 = int_to_ptr.vmem [resolvable:$true] %s41
      %47 = dma.hbm_to_vmem [thread:$0]  %s40, 256, %s42, [#allocation7], 128, 128, 8
    $region9: #{tpu_custom_call.1} parent=1 // pred_fallthru
      _
    // Predicated region
    $region10: #{tpu_custom_call.1} parent=1 // pred_check
      _
    $region11: #{tpu_custom_call.1} parent=1 // pred_check_branch
      %49 = sbr.rel (0) target = $region13
    $region12: #{tpu_custom_call.1} parent=1 // pred_region
      %51 = dma.done [#allocation4], 256
    $region13: #{tpu_custom_call.1} parent=1 // pred_fallthru
      _
    // Predicated region
    $region14: #{tpu_custom_call.1} parent=1 // pred_check
      _
    $region15: #{tpu_custom_call.1} parent=1 // pred_check_branch
      %53 = sbr.rel (0) target = $region17
    $region16: #{tpu_custom_call.1} parent=1 // pred_region
      %55 = dma.done [#allocation7], 256
    $region17: #{tpu_custom_call.1} parent=1 // pred_fallthru
      _
    %s56 = sadd.s32 0, 0
    %p57 = scmp.lt.s32.totalorder %s56, 0
    %s58 = scalar_select %p57, %s56, 0
    %s59 = smul.u32 2, %s58
    %s60 = sadd.s32 0, 0
    %p61 = scmp.lt.s32.totalorder %s60, 0
    %s62 = scalar_select %p61, %s60, 0
    %s63 = smul.u32 2, %s62
    %p64 = scmp.eq.s32.totalorder 0, 0
    // Predicated region
    $region18: #{tpu_custom_call.1} parent=1 // pred_check
      %p65 = pneg %p64
    $region19: #{tpu_custom_call.1} parent=1 // pred_check_branch
      %67 = sbr.rel (%p65) target = $region21
    $region20: #{tpu_custom_call.1} parent=1 // pred_region
      %68 = vst [vmem:[#allocation2] sm:$0xff] 0.0
    $region21: #{tpu_custom_call.1} parent=1 // pred_fallthru
      _
    %s69 = sadd.s32 0, 0
    %s70 = smul.u32 %s69, 16
    %s71 = sadd.s32 %s70, 16
    %p72 = scmp.le.s32.totalorder %s71, 16
    // Predicated region
    $region22: #{tpu_custom_call.1} parent=1 // pred_check
      %p73 = pneg %p72
    $region23: #{tpu_custom_call.1} parent=1 // pred_check_branch
      %75 = sbr.rel (%p73) target = $region25
    $region24: #{tpu_custom_call.1} parent=1 // pred_region
      %v76 = vld [vmem:[#allocation2] sm:$0xff]
      %v77 = vld [vmem:[#allocation3] sm:$0xff]
      %v78 = vld [vmem:[#allocation3 + $0x8] sm:$0xff]
      %v79 = vld [vmem:[#allocation6] sm:$0xff]
      %v80 = vld [vmem:[#allocation6 + $0x8] sm:$0xff]
      %v81 = vsub.f32 %v77, %v79
      %v82 = vsub.f32 %v78, %v80
      %v83 = vmul.f32 %v81, -2.0
      %v84 = vmul.f32 %v82, -2.0
      %v85 = vmax.f32 %v81, %v83
      %v86 = vmax.f32 %v82, %v84
      %v87 = vadd.f32 %v85, %v86
      %v88 = vadd.f32 %v87, 0.0
      %v89 = vadd.f32 %v76, %v88
      %90 = vst [vmem:[#allocation2] sm:$0xff] %v89
    $region25: #{tpu_custom_call.1} parent=1 // pred_fallthru
      _
    %p91 = pneg %p72
    // Predicated region
    $region26: #{tpu_custom_call.1} parent=1 // pred_check
      _
    $region27: #{tpu_custom_call.1} parent=1 // pred_check_branch
      %93 = sbr.rel (%p72) target = $region29
    $region28: #{tpu_custom_call.1} parent=1 // pred_region
      %v94 = vlaneseq
      %v95 = vshrl.u32 %v94, 7
      %v96 = vadd.s32 %v95, 8
      %v97 = vld [vmem:[#allocation2] sm:$0xff]
      %v98 = vld [vmem:[#allocation3] sm:$0xff]
      %v99 = vld [vmem:[#allocation3 + $0x8] sm:$0xff]
      %v100 = vld [vmem:[#allocation6] sm:$0xff]
      %v101 = vld [vmem:[#allocation6 + $0x8] sm:$0xff]
      %v102 = vsub.f32 %v98, %v100
      %v103 = vsub.f32 %v99, %v101
      %v104 = vmul.f32 %v102, -2.0
      %v105 = vmul.f32 %v103, -2.0
      %v106 = vmax.f32 %v102, %v104
      %v107 = vmax.f32 %v103, %v105
      %v108 = vstv %s70
      %v109 = vadd.s32 %v95, %v108
      %v110 = vadd.s32 %v96, %v108
      %vm111 = vcmp.lt.s32.totalorder %v109, 16
      %vm112 = vcmp.lt.s32.totalorder %v110, 16
      %v113 = vsel %vm111, %v106, 0.0
      %v114 = vsel %vm112, %v107, 0.0
      %v115 = vadd.f32 %v113, %v114
      %v116 = vadd.f32 %v115, 0.0
      %v117 = vadd.f32 %v97, %v116
      %118 = vst [vmem:[#allocation2] sm:$0xff] %v117
    $region29: #{tpu_custom_call.1} parent=1 // pred_fallthru
      _
    // Predicated region
    $region30: #{tpu_custom_call.1} parent=1 // pred_check
      %p119 = pneg %p64
    $region31: #{tpu_custom_call.1} parent=1 // pred_check_branch
      %121 = sbr.rel (%p119) target = $region33
    $region32: #{tpu_custom_call.1} parent=1 // pred_region
      %v122 = vld [vmem:[#allocation2] sm:$0xff]
      %123 = vadd.xlane.f32.xlu0 %v122
      %v124 = vpop.xlane.xlu0 %123
      %v125 = vrot.slane %v124, 4
      %v126 = vadd.f32 %v124, %v125
      %v127 = vrot.slane %v126, 2
      %v128 = vadd.f32 %v126, %v127
      %v129 = vrot.slane %v128, 1
      %v130 = vadd.f32 %v128, %v129
      %s131 = vtos %v130
      %s132 = scalar_lea.smem [#allocation8], 0
      %133 = sst [smem:[%s132]] %s131
    $region33: #{tpu_custom_call.1} parent=1 // pred_fallthru
      _
    // Predicated region
    $region34: #{tpu_custom_call.1} parent=1 // pred_check
      _
    $region35: #{tpu_custom_call.1} parent=1 // pred_check_branch
      %135 = sbr.rel (0) target = $region37
    $region36: #{tpu_custom_call.1} parent=1 // pred_region
      %137 = vsyncadd [#allocation5], 0
      %s139 = sshll.u32 %s2, 4
      %s140 = int_to_ptr.hbm [resolvable:$true] %s139
      %142 = dma.smem_to_hbm [#allocation8], 16, %s140, [#allocation5]
    $region37: #{tpu_custom_call.1} parent=1 // pred_fallthru
      _
    // Predicated region
    $region38: #{tpu_custom_call.1} parent=1 // pred_check
      _
    $region39: #{tpu_custom_call.1} parent=1 // pred_check_branch
      %144 = sbr.rel (0) target = $region41
    $region40: #{tpu_custom_call.1} parent=1 // pred_region
      %146 = dma.done [#allocation5], 16
    $region41: #{tpu_custom_call.1} parent=1 // pred_fallthru
      _
    %147 = sfence
    %148 = vsyncpa [#allocation4], 1
    %149 = vsyncpa [#allocation7], 1
    %150 = vsyncpa [#allocation5], 1

</llo_original>
